<compile_context>
chip_gen: v7x
topology: tpu7x:2x2x1
jax: 0.10.0
libtpu: 0.0.40
codegen_flags: <defaults>
</compile_context>

<pallas_src>
import functools

import jax
import jax.numpy as jnp
from jax import lax
from jax.experimental import pallas as pl
from jax.experimental.pallas import tpu as pltpu

IN_DIM = 21 * 3 + 3   # 66
H1 = 45
H2 = 35
OUT_DIM = 5

ROW_CHUNK = 256          # rows per in-kernel chunk; intermediates stay in vregs
DEFAULT_TILE_B = 4096    # batch rows per grid step (multiple of ROW_CHUNK)

_PARAM_ELEMS = IN_DIM * H1 + H1 + H1 * H2 + H2 + H2 * OUT_DIM + OUT_DIM


def _round_up(n, m):
    return ((n + m - 1) // m) * m


def handnet2_kernel(x_ref, w1_ref, b1_ref, w2_ref, b2_ref, w3_ref, b3_ref,
                    o_ref, *, chunk):
    """One batch tile: fused layer1->ReLU->layer2->ReLU->layer3 per row chunk."""
    tb = x_ref.shape[0]

    # Hoisted out of the chunk loop: weight loads and bias broadcasts (JAX does
    # not CSE broadcast_in_dim, so broadcasting per iteration repeats the work).
    w1 = w1_ref[...]
    w2 = w2_ref[...]
    w3 = w3_ref[...]
    b1 = jnp.broadcast_to(b1_ref[...], (chunk, H1))
    b2 = jnp.broadcast_to(b2_ref[...], (chunk, H2))
    b3 = jnp.broadcast_to(b3_ref[...], (chunk, OUT_DIM))

    def mlp(x, nrows):
        h1 = jnp.maximum(
            jnp.dot(x, w1, preferred_element_type=jnp.float32) + b1[:nrows], 0.0)
        h2 = jnp.maximum(
            jnp.dot(h1, w2, preferred_element_type=jnp.float32) + b2[:nrows], 0.0)
        return jnp.dot(h2, w3, preferred_element_type=jnp.float32) + b3[:nrows]

    n_full = tb // chunk            # static
    rem = tb - n_full * chunk       # static, multiple of 8

    if n_full > 0:
        def body(c, carry):
            r0 = pl.multiple_of(c * chunk, chunk)
            x = x_ref[pl.ds(r0, chunk), :]
            o_ref[pl.ds(r0, chunk), :] = mlp(x, chunk).astype(o_ref.dtype)
            return carry

        lax.fori_loop(0, n_full, body, 0, unroll=True)

    if rem > 0:
        r0 = n_full * chunk         # static offset
        x = x_ref[pl.ds(r0, rem), :]
        o_ref[pl.ds(r0, rem), :] = mlp(x, rem).astype(o_ref.dtype)


@functools.partial(jax.jit, static_argnames=("tile_b",))
def handnet2_forward(x, params, *, tile_b=DEFAULT_TILE_B):
    """x: (B, 66) float32 -> (B, 5) float32."""
    B = x.shape[0]
    w1, b1, w2, b2, w3, b3 = (params["w1"], params["b1"], params["w2"],
                              params["b2"], params["w3"], params["b3"])

    # Adaptive tiling: never pad x on the host (the last block is handled by
    # Pallas' masked boundary reads/writes); waste at most a few rows.  Force
    # >=2 balanced grid steps when B is large enough so both v7x TensorCores
    # get work under dimension_semantics=("parallel",).
    n_tiles = max(1, pl.cdiv(B, tile_b))
    if B >= 2 * ROW_CHUNK:
        n_tiles = max(n_tiles, 2)
        if n_tiles % 2:
            n_tiles += 1
    tb = _round_up(pl.cdiv(B, n_tiles), 8)
    grid_b = pl.cdiv(B, tb)
    chunk = min(ROW_CHUNK, tb)

    kernel = functools.partial(handnet2_kernel, chunk=chunk)

    # Parameters: full-array blocks, constant index_map -> VMEM-resident
    # across grid steps (no per-tile re-DMA of the ~19 KB of parameters).
    resident = lambda arr: pl.BlockSpec(arr.shape, lambda i: (0, 0))

    cost = pl.CostEstimate(
        flops=2 * B * (IN_DIM * H1 + H1 * H2 + H2 * OUT_DIM),
        transcendentals=0,
        bytes_accessed=4 * (B * (IN_DIM + OUT_DIM) + _PARAM_ELEMS))

    return pl.pallas_call(
        kernel,
        out_shape=jax.ShapeDtypeStruct((B, OUT_DIM), jnp.float32),
        grid=(grid_b,),
        in_specs=[
            pl.BlockSpec((tb, IN_DIM), lambda i: (i, 0)),      # x: batch-tiled
            resident(w1), resident(b1),
            resident(w2), resident(b2),
            resident(w3), resident(b3),
        ],
        out_specs=pl.BlockSpec((tb, OUT_DIM), lambda i: (i, 0)),
        compiler_params=pltpu.CompilerParams(
            dimension_semantics=("parallel",)),
        cost_estimate=cost,
    )(x, w1, b1, w2, b2, w3, b3)


def init_params(key):
    """Deterministic parameter init matching nn.Linear shapes.

    PyTorch nn.Linear stores weight as (out, in); we store the transpose
    (in, out) so the kernel computes x @ W + b. Biases kept 2-D (1, out)."""
    ks = jax.random.split(key, 6)

    def linear(kw, kb, fan_in, fan_out):
        bound = 1.0 / jnp.sqrt(fan_in)
        w = jax.random.uniform(kw, (fan_in, fan_out), jnp.float32,
                               minval=-bound, maxval=bound)
        b = jax.random.uniform(kb, (1, fan_out), jnp.float32,
                               minval=-bound, maxval=bound)
        return w, b

    w1, b1 = linear(ks[0], ks[1], IN_DIM, H1)
    w2, b2 = linear(ks[2], ks[3], H1, H2)
    w3, b3 = linear(ks[4], ks[5], H2, OUT_DIM)
    return {"w1": w1, "b1": b1, "w2": w2, "b2": b2, "w3": w3, "b3": b3}


def reference_forward(x, p):
    h1 = jnp.maximum(x @ p["w1"] + p["b1"], 0.0)
    h2 = jnp.maximum(h1 @ p["w2"] + p["b2"], 0.0)
    return h2 @ p["w3"] + p["b3"]


if __name__ == "__main__":
    key = jax.random.PRNGKey(0)
    k_param, k_x1, k_x2, k_x3 = jax.random.split(key, 4)

    params = init_params(k_param)

    # Small batch: single tile, single in-kernel chunk.
    B1 = 8
    x1 = jax.random.normal(k_x1, (B1, IN_DIM), jnp.float32)
    out1 = jax.block_until_ready(handnet2_forward(x1, params))
    ref1 = reference_forward(x1, params)
    assert out1.shape == (B1, OUT_DIM)
    assert jnp.allclose(out1, ref1, atol=1e-4, rtol=1e-4)

    # Non-divisible batch with a small tile: exercises the masked boundary
    # block (no host-side padding) across a multi-step pipelined grid.
    B2 = 100
    x2 = jax.random.normal(k_x2, (B2, IN_DIM), jnp.float32)
    out2 = jax.block_until_ready(handnet2_forward(x2, params, tile_b=32))
    ref2 = reference_forward(x2, params)
    assert out2.shape == (B2, OUT_DIM)
    assert jnp.allclose(out2, ref2, atol=1e-4, rtol=1e-4)

    # Larger batch: >=2 grid steps (v7x megacore path), full chunk + remainder
    # chunk inside each tile, masked boundary rows in the last tile.
    B3 = 600
    x3 = jax.random.normal(k_x3, (B3, IN_DIM), jnp.float32)
    out3 = jax.block_until_ready(handnet2_forward(x3, params))
    ref3 = reference_forward(x3, params)
    assert out3.shape == (B3, OUT_DIM)
    assert jnp.allclose(out3, ref3, atol=1e-4, rtol=1e-4)

    print("KERNEL_OK")
</pallas_src>

<mosaic_0001>
module attributes {stable_mosaic.version = 11 : i64} {
  func.func @handnet2_kernel(%arg0: i32, %arg1: memref<8x66xf32, #tpu.memory_space<vmem>>, %arg2: memref<66x45xf32, #tpu.memory_space<vmem>>, %arg3: memref<1x45xf32, #tpu.memory_space<vmem>>, %arg4: memref<45x35xf32, #tpu.memory_space<vmem>>, %arg5: memref<1x35xf32, #tpu.memory_space<vmem>>, %arg6: memref<35x5xf32, #tpu.memory_space<vmem>>, %arg7: memref<1x5xf32, #tpu.memory_space<vmem>>, %arg8: memref<8x5xf32, #tpu.memory_space<vmem>>) attributes {dimension_semantics = [#tpu.dimension_semantics<parallel>], iteration_bounds = array<i64: 1>, scalar_prefetch = 0 : i64, scratch_operands = 0 : i64, tpu.core_type = #tpu.core_type<tc>, window_params = [{transform_indices = @transform_0, window_bounds = array<i64: 8, 66>}, {pipeline_mode = #tpu.pipeline_mode<synchronous>, transform_indices = @transform_1, window_bounds = array<i64: 66, 45>}, {pipeline_mode = #tpu.pipeline_mode<synchronous>, transform_indices = @transform_2, window_bounds = array<i64: 1, 45>}, {pipeline_mode = #tpu.pipeline_mode<synchronous>, transform_indices = @transform_3, window_bounds = array<i64: 45, 35>}, {pipeline_mode = #tpu.pipeline_mode<synchronous>, transform_indices = @transform_4, window_bounds = array<i64: 1, 35>}, {pipeline_mode = #tpu.pipeline_mode<synchronous>, transform_indices = @transform_5, window_bounds = array<i64: 35, 5>}, {pipeline_mode = #tpu.pipeline_mode<synchronous>, transform_indices = @transform_6, window_bounds = array<i64: 1, 5>}, {transform_indices = @transform_7, window_bounds = array<i64: 8, 5>}]} {
    %c0 = arith.constant 0 : index
    %c0_0 = arith.constant 0 : index
    %0 = vector.load %arg2[%c0, %c0_0] : memref<66x45xf32, #tpu.memory_space<vmem>>, vector<66x45xf32>
    %c0_1 = arith.constant 0 : index
    %c0_2 = arith.constant 0 : index
    %1 = vector.load %arg4[%c0_1, %c0_2] : memref<45x35xf32, #tpu.memory_space<vmem>>, vector<45x35xf32>
    %c0_3 = arith.constant 0 : index
    %c0_4 = arith.constant 0 : index
    %2 = vector.load %arg6[%c0_3, %c0_4] : memref<35x5xf32, #tpu.memory_space<vmem>>, vector<35x5xf32>
    %c0_5 = arith.constant 0 : index
    %c0_6 = arith.constant 0 : index
    %3 = vector.load %arg3[%c0_5, %c0_6] : memref<1x45xf32, #tpu.memory_space<vmem>>, vector<1x45xf32>
    %4 = vector.shape_cast %3 : vector<1x45xf32> to vector<1x45xf32>
    %5 = vector.broadcast %4 : vector<1x45xf32> to vector<8x45xf32>
    %c0_7 = arith.constant 0 : index
    %c0_8 = arith.constant 0 : index
    %6 = vector.load %arg5[%c0_7, %c0_8] : memref<1x35xf32, #tpu.memory_space<vmem>>, vector<1x35xf32>
    %7 = vector.shape_cast %6 : vector<1x35xf32> to vector<1x35xf32>
    %8 = vector.broadcast %7 : vector<1x35xf32> to vector<8x35xf32>
    %c0_9 = arith.constant 0 : index
    %c0_10 = arith.constant 0 : index
    %9 = vector.load %arg7[%c0_9, %c0_10] : memref<1x5xf32, #tpu.memory_space<vmem>>, vector<1x5xf32>
    %10 = vector.shape_cast %9 : vector<1x5xf32> to vector<1x5xf32>
    %11 = vector.broadcast %10 : vector<1x5xf32> to vector<8x5xf32>
    %c0_i32 = arith.constant 0 : i32
    %c8_i32 = arith.constant 8 : i32
    %12 = arith.muli %c0_i32, %c8_i32 : i32
    %13 = tpu.assume_multiple %12, 8 : i32
    %14 = arith.index_cast %13 : i32 to index
    %c0_11 = arith.constant 0 : index
    %15 = vector.load %arg1[%14, %c0_11] : memref<8x66xf32, #tpu.memory_space<vmem>>, vector<8x66xf32>
    %cst = arith.constant dense<0.000000e+00> : vector<8x45xf32>
    %16 = tpu.matmul %15, %0, %cst {dimension_numbers = #tpu.dot_dimension_numbers<[1], [0], [0], [1], [0, 0, 1, 1], [], []>} : vector<8x66xf32>, vector<66x45xf32>, vector<8x45xf32> -> vector<8x45xf32>
    %17 = arith.addf %16, %5 : vector<8x45xf32>
    %cst_12 = arith.constant 0.000000e+00 : f32
    %18 = vector.broadcast %cst_12 : f32 to vector<8x45xf32>
    %19 = arith.maximumf %17, %18 : vector<8x45xf32>
    %cst_13 = arith.constant dense<0.000000e+00> : vector<8x35xf32>
    %20 = tpu.matmul %19, %1, %cst_13 {dimension_numbers = #tpu.dot_dimension_numbers<[1], [0], [0], [1], [0, 0, 1, 1], [], []>} : vector<8x45xf32>, vector<45x35xf32>, vector<8x35xf32> -> vector<8x35xf32>
    %21 = arith.addf %20, %8 : vector<8x35xf32>
    %cst_14 = arith.constant 0.000000e+00 : f32
    %22 = vector.broadcast %cst_14 : f32 to vector<8x35xf32>
    %23 = arith.maximumf %21, %22 : vector<8x35xf32>
    %cst_15 = arith.constant dense<0.000000e+00> : vector<8x5xf32>
    %24 = tpu.matmul %23, %2, %cst_15 {dimension_numbers = #tpu.dot_dimension_numbers<[1], [0], [0], [1], [0, 0, 1, 1], [], []>} : vector<8x35xf32>, vector<35x5xf32>, vector<8x5xf32> -> vector<8x5xf32>
    %25 = arith.addf %24, %11 : vector<8x5xf32>
    %26 = arith.index_cast %13 : i32 to index
    %c0_16 = arith.constant 0 : index
    %27 = vector.load %arg8[%26, %c0_16] : memref<8x5xf32, #tpu.memory_space<vmem>>, vector<8x5xf32>
    tpu.vector_store %arg8[%26, %c0_16], %25 {strides = array<i32>} : memref<8x5xf32, #tpu.memory_space<vmem>>, vector<8x5xf32>,
    %c1_i32 = arith.constant 1 : i32
    return
  }
  func.func @transform_0(%arg0: i32) -> (i32, i32) {
    %c0_i32 = arith.constant 0 : i32
    %c0_i32_0 = arith.constant 0 : i32
    return %arg0, %c0_i32 : i32, i32
  }
  func.func @transform_1(%arg0: i32) -> (i32, i32) {
    %c0_i32 = arith.constant 0 : i32
    %c0_i32_0 = arith.constant 0 : i32
    %c0_i32_1 = arith.constant 0 : i32
    return %c0_i32, %c0_i32_0 : i32, i32
  }
  func.func @transform_2(%arg0: i32) -> (i32, i32) {
    %c0_i32 = arith.constant 0 : i32
    %c0_i32_0 = arith.constant 0 : i32
    %c0_i32_1 = arith.constant 0 : i32
    return %c0_i32, %c0_i32_0 : i32, i32
  }
  func.func @transform_3(%arg0: i32) -> (i32, i32) {
    %c0_i32 = arith.constant 0 : i32
    %c0_i32_0 = arith.constant 0 : i32
    %c0_i32_1 = arith.constant 0 : i32
    return %c0_i32, %c0_i32_0 : i32, i32
  }
  func.func @transform_4(%arg0: i32) -> (i32, i32) {
    %c0_i32 = arith.constant 0 : i32
    %c0_i32_0 = arith.constant 0 : i32
    %c0_i32_1 = arith.constant 0 : i32
    return %c0_i32, %c0_i32_0 : i32, i32
  }
  func.func @transform_5(%arg0: i32) -> (i32, i32) {
    %c0_i32 = arith.constant 0 : i32
    %c0_i32_0 = arith.constant 0 : i32
    %c0_i32_1 = arith.constant 0 : i32
    return %c0_i32, %c0_i32_0 : i32, i32
  }
  func.func @transform_6(%arg0: i32) -> (i32, i32) {
    %c0_i32 = arith.constant 0 : i32
    %c0_i32_0 = arith.constant 0 : i32
    %c0_i32_1 = arith.constant 0 : i32
    return %c0_i32, %c0_i32_0 : i32, i32
  }
  func.func @transform_7(%arg0: i32) -> (i32, i32) {
    %c0_i32 = arith.constant 0 : i32
    %c0_i32_0 = arith.constant 0 : i32
    return %arg0, %c0_i32 : i32, i32
  }
}

</mosaic_0001>

<llo_original>
// kernel: handnet2_forward.1
$region0: #{handnet2_forward.1}
  #allocation0 [shape = 'u32[]', space=smem, size = 0x4, offset = 0x4, fixed_abs, tag = 'smem constant byte address 0x4 - core index']
  #allocation1 [shape = 'u32[144,128]{1,0:T(1,128)}', space=vmem, size = 0x12000, scoped, tag = 'internal scratch']
  %s0 = inlined_call_operand.vmem [shape: f32[8,66], index: 0, kind: input, shape index: {}]
  %s1 = inlined_call_operand.vmem [shape: f32[66,45], index: 1, kind: input, shape index: {}]
  %s2 = inlined_call_operand.vmem [shape: f32[1,45], index: 2, kind: input, shape index: {}]
  %s3 = inlined_call_operand.vmem [shape: f32[45,35], index: 3, kind: input, shape index: {}]
  %s4 = inlined_call_operand.vmem [shape: f32[1,35], index: 4, kind: input, shape index: {}]
  %s5 = inlined_call_operand.vmem [shape: f32[35,5], index: 5, kind: input, shape index: {}]
  %s6 = inlined_call_operand.vmem [shape: f32[1,5], index: 6, kind: input, shape index: {}]
  %s7 = inlined_call_operand.hbm [shape: f32[8,5], index: 7, kind: output, shape index: {}]
  %s8 = sld [smem:[#allocation0]]
  $region38: #{handnet2_forward.1} parent=0
    _
  %s10 = ssub.s32 1, %s8
  %s11 = scalar_select 0, %s10, %s8
  $region1: #{handnet2_forward.1} parent=0
    #allocation2 [shape = 'u8[4096]{0}', space=vmem, size = 0x1000, scoped, tag = 'output window, operand 0, single buffered']
    #allocation3 [shape = 's32[1]{0}', space=sflag, size = 0x4, scoped, tag = 'scoped memory for handnet2_forward.1']
    %12 = vsyncpa [#allocation3], 0
    // Predicated region
    $region2: #{handnet2_forward.1} parent=1 // pred_check
      _
    $region3: #{handnet2_forward.1} parent=1 // pred_check_branch
      %14 = sbr.rel (0) target = $region5
    $region4: #{handnet2_forward.1} parent=1 // pred_region
      _
    $region5: #{handnet2_forward.1} parent=1 // pred_fallthru
      _
    // Predicated region
    $region6: #{handnet2_forward.1} parent=1 // pred_check
      _
    $region7: #{handnet2_forward.1} parent=1 // pred_check_branch
      %16 = sbr.rel (0) target = $region9
    $region8: #{handnet2_forward.1} parent=1 // pred_region
      _
    $region9: #{handnet2_forward.1} parent=1 // pred_fallthru
      _
    // Predicated region
    $region10: #{handnet2_forward.1} parent=1 // pred_check
      _
    $region11: #{handnet2_forward.1} parent=1 // pred_check_branch
      %18 = sbr.rel (0) target = $region13
    $region12: #{handnet2_forward.1} parent=1 // pred_region
      _
    $region13: #{handnet2_forward.1} parent=1 // pred_fallthru
      _
    // Predicated region
    $region14: #{handnet2_forward.1} parent=1 // pred_check
      _
    $region15: #{handnet2_forward.1} parent=1 // pred_check_branch
      %20 = sbr.rel (0) target = $region17
    $region16: #{handnet2_forward.1} parent=1 // pred_region
      _
    $region17: #{handnet2_forward.1} parent=1 // pred_fallthru
      _
    // Predicated region
    $region18: #{handnet2_forward.1} parent=1 // pred_check
      _
    $region19: #{handnet2_forward.1} parent=1 // pred_check_branch
      %22 = sbr.rel (0) target = $region21
    $region20: #{handnet2_forward.1} parent=1 // pred_region
      _
    $region21: #{handnet2_forward.1} parent=1 // pred_fallthru
      _
    // Predicated region
    $region22: #{handnet2_forward.1} parent=1 // pred_check
      _
    $region23: #{handnet2_forward.1} parent=1 // pred_check_branch
      %24 = sbr.rel (0) target = $region25
    $region24: #{handnet2_forward.1} parent=1 // pred_region
      _
    $region25: #{handnet2_forward.1} parent=1 // pred_fallthru
      _
    // Predicated region
    $region26: #{handnet2_forward.1} parent=1 // pred_check
      _
    $region27: #{handnet2_forward.1} parent=1 // pred_check_branch
      %26 = sbr.rel (0) target = $region29
    $region28: #{handnet2_forward.1} parent=1 // pred_region
      _
    $region29: #{handnet2_forward.1} parent=1 // pred_fallthru
      _
    %v27 = vld [vmem:[%s1] sm:$0xff]
    %v28 = vld [vmem:[%s1 + $0x8] sm:$0xff]
    %v29 = vld [vmem:[%s1 + $0x10] sm:$0xff]
    %v30 = vld [vmem:[%s1 + $0x18] sm:$0xff]
    %v31 = vld [vmem:[%s1 + $0x20] sm:$0xff]
    %v32 = vld [vmem:[%s1 + $0x28] sm:$0xff]
    %v33 = vld [vmem:[%s1 + $0x30] sm:$0xff]
    %v34 = vld [vmem:[%s1 + $0x38] sm:$0xff]
    %v35 = vld [vmem:[%s1 + $0x40] sm:$0x3]
    %v36 = vld [vmem:[%s3] sm:$0xff]
    %v37 = vld [vmem:[%s3 + $0x8] sm:$0xff]
    %v38 = vld [vmem:[%s3 + $0x10] sm:$0xff]
    %v39 = vld [vmem:[%s3 + $0x18] sm:$0xff]
    %v40 = vld [vmem:[%s3 + $0x20] sm:$0xff]
    %v41 = vld [vmem:[%s3 + $0x28] sm:$0x1f]
    %v42 = vld [vmem:[%s5] sm:$0xff]
    %v43 = vld [vmem:[%s5 + $0x8] sm:$0xff]
    %v44 = vld [vmem:[%s5 + $0x10] sm:$0xff]
    %v45 = vld [vmem:[%s5 + $0x18] sm:$0xff]
    %v46 = vld [vmem:[%s5 + $0x20] sm:$0x7]
    %v47 = vld [vmem:[%s2] sm:$0x1]
    %v49 = vlaneseq
    %v50 = vshrl.u32 %v49, 7
    %v51 = vsub.s32 0, %v50
    %v52 = vrot.slane %v47, %v51
    %v54 = vld [vmem:[%s4] sm:$0x1]
    %v56 = vlaneseq
    %v57 = vshrl.u32 %v56, 7
    %v58 = vsub.s32 0, %v57
    %v59 = vrot.slane %v54, %v58
    %v61 = vld [vmem:[%s6] sm:$0x1]
    %v63 = vlaneseq
    %v64 = vshrl.u32 %v63, 7
    %v65 = vsub.s32 0, %v64
    %v66 = vrot.slane %v61, %v65
    %v68 = vld [vmem:[%s0] sm:$0xff]
    %vm69 = vcmask 539648
    %v71 = vsel %vm69, %v68, 0
    %vm73 = vcmask 1041408
    %v75 = vsel %vm73, %v35, 0
    %77 = vmatprep.subr.mxu0 0.0
    %78 = vmatpush1.msra.mxu0 %v27
    %79 = vmatprep.subr.mxu0 0.0
    %80 = vmatpush1.msra.mxu0 %v28
    %81 = vmatprep.subr.mxu0 0.0
    %82 = vmatpush1.msra.mxu0 %v29
    %83 = vmatprep.subr.mxu0 0.0
    %84 = vmatpush1.msra.mxu0 %v30
    %85 = vmatprep.subr.mxu0 0.0
    %86 = vmatpush1.msra.mxu0 %v31
    %87 = vmatprep.subr.mxu0 0.0
    %88 = vmatpush1.msra.mxu0 %v32
    %89 = vmatprep.subr.mxu0 0.0
    %90 = vmatpush1.msra.mxu0 %v33
    %91 = vmatprep.subr.mxu0 0.0
    %92 = vmatpush1.msra.mxu0 %v34
    %93 = vmatprep.subr.mxu0 0.0
    %94 = vmatpush1.msra.mxu0 %v75
    %95 = vmatprep.subr.mxu0 0.0
    %96 = vmatpush1.msra.mxu0 0.0
    %97 = vmatprep.subr.mxu0 0.0
    %98 = vmatpush1.msra.mxu0 0.0
    %99 = vmatprep.subr.mxu0 0.0
    %100 = vmatpush1.msra.mxu0 0.0
    %101 = vmatprep.subr.mxu0 0.0
    %102 = vmatpush1.msra.mxu0 0.0
    %103 = vmatprep.subr.mxu0 0.0
    %104 = vmatpush1.msra.mxu0 0.0
    %105 = vmatprep.subr.mxu0 0.0
    %106 = vmatpush1.msra.mxu0 0.0
    %107 = vmatprep.subr.mxu0 0.0
    %108 = vmatpush1.msra.mxu0 0.0
    %109 = vmatprep.subr.mxu0 0.0
    %110 = vmatpush1.msra.mxu0 0.0
    %111 = vmatprep.subr.mxu0 0.0
    %112 = vmatpush1.msra.mxu0 0.0
    %113 = vmatprep.subr.mxu0 0.0
    %114 = vmatpush1.msra.mxu0 0.0
    %115 = vmatprep.subr.mxu0 0.0
    %116 = vmatpush1.msra.mxu0 0.0
    %117 = vmatprep.subr.mxu0 0.0
    %118 = vmatpush1.msra.mxu0 0.0
    %119 = vmatprep.subr.mxu0 0.0
    %120 = vmatpush1.msra.mxu0 0.0
    %121 = vmatprep.subr.mxu0 0.0
    %122 = vmatpush1.msra.mxu0 0.0
    %123 = vmatprep.subr.mxu0 0.0
    %124 = vmatpush1.msra.mxu0 0.0
    %125 = vmatprep.subr.mxu0 0.0
    %126 = vmatpush1.msra.mxu0 0.0
    %127 = vmatprep.subr.mxu0 0.0
    %128 = vmatpush1.msra.mxu0 0.0
    %129 = vmatprep.subr.mxu0 0.0
    %130 = vmatpush1.msra.mxu0 0.0
    %131 = vmatprep.subr.mxu0 0.0
    %132 = vmatpush1.msra.mxu0 0.0
    %133 = vmatprep.subr.mxu0 0.0
    %134 = vmatpush1.msra.mxu0 0.0
    %135 = vmatprep.subr.mxu0 0.0
    %136 = vmatpush1.msra.mxu0 0.0
    %137 = vmatprep.subr.mxu0 0.0
    %138 = vmatpush1.msra.mxu0 0.0
    %139 = vmatprep.subr.mxu0 0.0
    %140 = vmatpush1.msra.mxu0 0.0
    %141 = vmatprep.mubr.f32.mxu0 0.0
    %142 = vmatmul.mubr.f32.gmra.mrb[0].mxu0 %v71
    %v143 = vpop.f32.mrb[0].mxu0
    %v144 = vadd.f32 %v52, %v143
    %v145 = vpop.f32.mrb[0].mxu0
    %146 = vdwg.mxu0
    %v147 = vmax.f32 %v144, 0.0
    %vm148 = vcmask 367616
    %v150 = vsel %vm148, %v147, 0
    %vm152 = vcmask 1044480
    %v154 = vsel %vm152, %v41, 0
    %156 = vmatprep.subr.mxu0 0.0
    %157 = vmatpush1.msra.mxu0 %v36
    %158 = vmatprep.subr.mxu0 0.0
    %159 = vmatpush1.msra.mxu0 %v37
    %160 = vmatprep.subr.mxu0 0.0
    %161 = vmatpush1.msra.mxu0 %v38
    %162 = vmatprep.subr.mxu0 0.0
    %163 = vmatpush1.msra.mxu0 %v39
    %164 = vmatprep.subr.mxu0 0.0
    %165 = vmatpush1.msra.mxu0 %v40
    %166 = vmatprep.subr.mxu0 0.0
    %167 = vmatpush1.msra.mxu0 %v154
    %168 = vmatprep.subr.mxu0 0.0
    %169 = vmatpush1.msra.mxu0 0.0
    %170 = vmatprep.subr.mxu0 0.0
    %171 = vmatpush1.msra.mxu0 0.0
    %172 = vmatprep.subr.mxu0 0.0
    %173 = vmatpush1.msra.mxu0 0.0
    %174 = vmatprep.subr.mxu0 0.0
    %175 = vmatpush1.msra.mxu0 0.0
    %176 = vmatprep.subr.mxu0 0.0
    %177 = vmatpush1.msra.mxu0 0.0
    %178 = vmatprep.subr.mxu0 0.0
    %179 = vmatpush1.msra.mxu0 0.0
    %180 = vmatprep.subr.mxu0 0.0
    %181 = vmatpush1.msra.mxu0 0.0
    %182 = vmatprep.subr.mxu0 0.0
    %183 = vmatpush1.msra.mxu0 0.0
    %184 = vmatprep.subr.mxu0 0.0
    %185 = vmatpush1.msra.mxu0 0.0
    %186 = vmatprep.subr.mxu0 0.0
    %187 = vmatpush1.msra.mxu0 0.0
    %188 = vmatprep.subr.mxu0 0.0
    %189 = vmatpush1.msra.mxu0 0.0
    %190 = vmatprep.subr.mxu0 0.0
    %191 = vmatpush1.msra.mxu0 0.0
    %192 = vmatprep.subr.mxu0 0.0
    %193 = vmatpush1.msra.mxu0 0.0
    %194 = vmatprep.subr.mxu0 0.0
    %195 = vmatpush1.msra.mxu0 0.0
    %196 = vmatprep.subr.mxu0 0.0
    %197 = vmatpush1.msra.mxu0 0.0
    %198 = vmatprep.subr.mxu0 0.0
    %199 = vmatpush1.msra.mxu0 0.0
    %200 = vmatprep.subr.mxu0 0.0
    %201 = vmatpush1.msra.mxu0 0.0
    %202 = vmatprep.subr.mxu0 0.0
    %203 = vmatpush1.msra.mxu0 0.0
    %204 = vmatprep.subr.mxu0 0.0
    %205 = vmatpush1.msra.mxu0 0.0
    %206 = vmatprep.subr.mxu0 0.0
    %207 = vmatpush1.msra.mxu0 0.0
    %208 = vmatprep.subr.mxu0 0.0
    %209 = vmatpush1.msra.mxu0 0.0
    %210 = vmatprep.subr.mxu0 0.0
    %211 = vmatpush1.msra.mxu0 0.0
    %212 = vmatprep.subr.mxu0 0.0
    %213 = vmatpush1.msra.mxu0 0.0
    %214 = vmatprep.subr.mxu0 0.0
    %215 = vmatpush1.msra.mxu0 0.0
    %216 = vmatprep.subr.mxu0 0.0
    %217 = vmatpush1.msra.mxu0 0.0
    %218 = vmatprep.subr.mxu0 0.0
    %219 = vmatpush1.msra.mxu0 0.0
    %220 = vmatprep.mubr.f32.mxu0 0.0
    %221 = vmatmul.mubr.f32.gmra.mrb[0].mxu0 %v150
    %v222 = vpop.f32.mrb[0].mxu0
    %v223 = vadd.f32 %v59, %v222
    %v224 = vpop.f32.mrb[0].mxu0
    %225 = vdwg.mxu0
    %v226 = vmax.f32 %v223, 0.0
    %vm227 = vcmask 285696
    %v229 = vsel %vm227, %v226, 0
    %vm231 = vcmask 1042432
    %v233 = vsel %vm231, %v46, 0
    %235 = vmatprep.subr.mxu0 0.0
    %236 = vmatpush1.msra.mxu0 %v42
    %237 = vmatprep.subr.mxu0 0.0
    %238 = vmatpush1.msra.mxu0 %v43
    %239 = vmatprep.subr.mxu0 0.0
    %240 = vmatpush1.msra.mxu0 %v44
    %241 = vmatprep.subr.mxu0 0.0
    %242 = vmatpush1.msra.mxu0 %v45
    %243 = vmatprep.subr.mxu0 0.0
    %244 = vmatpush1.msra.mxu0 %v233
    %245 = vmatprep.subr.mxu0 0.0
    %246 = vmatpush1.msra.mxu0 0.0
    %247 = vmatprep.subr.mxu0 0.0
    %248 = vmatpush1.msra.mxu0 0.0
    %249 = vmatprep.subr.mxu0 0.0
    %250 = vmatpush1.msra.mxu0 0.0
    %251 = vmatprep.subr.mxu0 0.0
    %252 = vmatpush1.msra.mxu0 0.0
    %253 = vmatprep.subr.mxu0 0.0
    %254 = vmatpush1.msra.mxu0 0.0
    %255 = vmatprep.subr.mxu0 0.0
    %256 = vmatpush1.msra.mxu0 0.0
    %257 = vmatprep.subr.mxu0 0.0
    %258 = vmatpush1.msra.mxu0 0.0
    %259 = vmatprep.subr.mxu0 0.0
    %260 = vmatpush1.msra.mxu0 0.0
    %261 = vmatprep.subr.mxu0 0.0
    %262 = vmatpush1.msra.mxu0 0.0
    %263 = vmatprep.subr.mxu0 0.0
    %264 = vmatpush1.msra.mxu0 0.0
    %265 = vmatprep.subr.mxu0 0.0
    %266 = vmatpush1.msra.mxu0 0.0
    %267 = vmatprep.subr.mxu0 0.0
    %268 = vmatpush1.msra.mxu0 0.0
    %269 = vmatprep.subr.mxu0 0.0
    %270 = vmatpush1.msra.mxu0 0.0
    %271 = vmatprep.subr.mxu0 0.0
    %272 = vmatpush1.msra.mxu0 0.0
    %273 = vmatprep.subr.mxu0 0.0
    %274 = vmatpush1.msra.mxu0 0.0
    %275 = vmatprep.subr.mxu0 0.0
    %276 = vmatpush1.msra.mxu0 0.0
    %277 = vmatprep.subr.mxu0 0.0
    %278 = vmatpush1.msra.mxu0 0.0
    %279 = vmatprep.subr.mxu0 0.0
    %280 = vmatpush1.msra.mxu0 0.0
    %281 = vmatprep.subr.mxu0 0.0
    %282 = vmatpush1.msra.mxu0 0.0
    %283 = vmatprep.subr.mxu0 0.0
    %284 = vmatpush1.msra.mxu0 0.0
    %285 = vmatprep.subr.mxu0 0.0
    %286 = vmatpush1.msra.mxu0 0.0
    %287 = vmatprep.subr.mxu0 0.0
    %288 = vmatpush1.msra.mxu0 0.0
    %289 = vmatprep.subr.mxu0 0.0
    %290 = vmatpush1.msra.mxu0 0.0
    %291 = vmatprep.subr.mxu0 0.0
    %292 = vmatpush1.msra.mxu0 0.0
    %293 = vmatprep.subr.mxu0 0.0
    %294 = vmatpush1.msra.mxu0 0.0
    %295 = vmatprep.subr.mxu0 0.0
    %296 = vmatpush1.msra.mxu0 0.0
    %297 = vmatprep.subr.mxu0 0.0
    %298 = vmatpush1.msra.mxu0 0.0
    %299 = vmatprep.mubr.f32.mxu0 0.0
    %300 = vmatmul.mubr.f32.gmra.mrb[0].mxu0 %v229
    %v301 = vpop.f32.mrb[0].mxu0
    %v302 = vadd.f32 %v66, %v301
    %v303 = vpop.f32.mrb[0].mxu0
    %304 = vdwg.mxu0
    %vm305 = vcmask 39936
    %306 = vst.msk [vmem:[#allocation2] sm:$0xff] %vm305, %v302
    // Predicated region
    $region30: #{handnet2_forward.1} parent=1 // pred_check
      _
    $region31: #{handnet2_forward.1} parent=1 // pred_check_branch
      %308 = sbr.rel (0) target = $region33
    $region32: #{handnet2_forward.1} parent=1 // pred_region
      %s310 = ssub.s32 128, 128
      %311 = vsyncadd [#allocation3], %s310
      %s313 = sshll.u32 [#allocation2], 4
      %s314 = int_to_ptr.vmem [resolvable:$true] %s313
      %316 = dma.vmem_to_hbm [thread:$0]  %s314, 128, %s7, [#allocation3]
    $region33: #{handnet2_forward.1} parent=1 // pred_fallthru
      _
    // Predicated region
    $region34: #{handnet2_forward.1} parent=1 // pred_check
      _
    $region35: #{handnet2_forward.1} parent=1 // pred_check_branch
      %318 = sbr.rel (0) target = $region37
    $region36: #{handnet2_forward.1} parent=1 // pred_region
      %319 = dma.done [#allocation3], 128
    $region37: #{handnet2_forward.1} parent=1 // pred_fallthru
      _
    %320 = vsyncpa [#allocation3], 1

</llo_original>
